<compile_context>
chip_gen: v6e
topology: v6e:2x2x1
jax: 0.10.0
libtpu: 0.0.40
codegen_flags: <defaults>
</compile_context>

<pallas_src>
import functools

import jax
import jax.numpy as jnp
import numpy as np
from jax.experimental import pallas as pl
from jax.experimental.pallas import tpu as pltpu


def denselayer_kernel(x_ref, p_ref, o_ref, *, H, W):
    # x_ref block: (1, Cin, H*W); p_ref: (Cout, Cin+11); o_ref block: (1, Cout, H*W)
    x = x_ref[0]                                   # (Cin, HW)
    P = p_ref[...]                                 # (Cout, Cin+11) packed params
    Cin, HW = x.shape
    Cout = o_ref.shape[1]
    c1 = Cin // 2
    c2 = Cout // 2

    w1t = P[:, 0:Cin]                              # (Cout, Cin)  == w1.T
    b1 = P[:, Cin:Cin + 1]                         # (Cout, 1)
    b3 = P[:, Cin + 10:Cin + 11]                   # (Cout, 1)

    # ---- My_Bn on input, folded into the 1x1-conv bias (exact, no padding) ----
    mean_lo = jnp.mean(x[:c1, :], axis=1, keepdims=True)        # (c1, 1)
    bias1 = b1
    for ci in range(c1):
        bias1 = bias1 - w1t[:, ci:ci + 1] * mean_lo[ci:ci + 1, :]

    # ---- compressLayer: 1x1 conv as Cin broadcast-FMAs on the VPU, + bias, ReLU ----
    y = w1t[:, 0:1] * x[0:1, :] + bias1                         # (Cout, HW)
    for ci in range(1, Cin):
        y = y + w1t[:, ci:ci + 1] * x[ci:ci + 1, :]
    y = jnp.maximum(y, 0.0)

    # ---- My_Bn on activations: masked per-channel mean subtraction ----
    mean_all = jnp.mean(y, axis=1, keepdims=True)               # (Cout, 1)
    chan = jax.lax.broadcasted_iota(jnp.int32, (Cout, 1), 0)
    yb = y - jnp.where(chan < c2, mean_all, 0.0)                # (Cout, HW)

    # ---- actlayer: depthwise 3x3 conv, padding=1, via lane rolls + boundary masks ----
    pidx = jax.lax.broadcasted_iota(jnp.int32, (1, HW), 1)      # flat spatial index
    if (W & (W - 1)) == 0:
        wcol = jnp.bitwise_and(pidx, W - 1)                     # p % W (power-of-2 fast path)
    else:
        wcol = pidx % W
    h_ge1 = pidx >= W                                           # h >= 1
    h_le = pidx < (H - 1) * W                                   # h <= H-2
    w_ge1 = wcol >= 1                                           # w >= 1
    w_le = wcol <= (W - 2)                                      # w <= W-2

    # center tap (dy=dx=0): no shift, no mask
    acc = yb * P[:, Cin + 1 + 4:Cin + 2 + 4]
    for t in range(9):
        if t == 4:
            continue
        dyo = t // 3 - 1
        dxo = t % 3 - 1
        s = dyo * W + dxo                                       # flat source offset
        # shifted[p] = yb[p + s]  (pltpu.roll matches jnp.roll semantics)
        shifted = pltpu.roll(yb, shift=(-s) % HW, axis=1)
        cond = None
        if dyo == -1:
            cond = h_ge1
        if dyo == 1:
            cond = h_le
        if dxo == -1:
            cond = w_ge1 if cond is None else (cond & w_ge1)
        if dxo == 1:
            cond = w_le if cond is None else (cond & w_le)
        if cond is not None:
            shifted = jnp.where(cond, shifted, 0.0)             # zero padding
        acc = acc + shifted * P[:, Cin + 1 + t:Cin + 2 + t]

    o_ref[0] = jnp.maximum(acc + b3, 0.0)


def denselayer_forward(x_nchw, w1, b1, w3, b3):
    """x_nchw: (N, Cin, H, W) float32; w1: (Cin, Cout); b1: (Cout,);
    w3: (3, 3, Cout) depthwise; b3: (Cout,).  Returns (N, Cout, H, W)."""
    N, Cin, H, W = x_nchw.shape
    Cout = w1.shape[1]
    HW = H * W

    # channels-on-sublane / spatial-on-lane layout: pure reshape, no transpose
    x = x_nchw.reshape(N, Cin, HW).astype(jnp.float32)

    # pack all parameters into one resident block: [w1^T | b1 | w3(9 taps, dy*3+dx) | b3]
    w1_t = jnp.transpose(w1).astype(jnp.float32)                        # (Cout, Cin)
    w3_f = jnp.transpose(w3.astype(jnp.float32), (2, 0, 1)).reshape(Cout, 9)
    params = jnp.concatenate(
        [w1_t,
         b1.reshape(Cout, 1).astype(jnp.float32),
         w3_f,
         b3.reshape(Cout, 1).astype(jnp.float32)], axis=1)              # (Cout, Cin+11)

    kernel = functools.partial(denselayer_kernel, H=H, W=W)
    out = pl.pallas_call(
        kernel,
        out_shape=jax.ShapeDtypeStruct((N, Cout, HW), jnp.float32),
        grid_spec=pltpu.PrefetchScalarGridSpec(
            num_scalar_prefetch=0,
            grid=(N,),
            in_specs=[
                pl.BlockSpec((1, Cin, HW), lambda n: (n, 0, 0)),
                pl.BlockSpec((Cout, Cin + 11), lambda n: (0, 0)),
            ],
            out_specs=pl.BlockSpec((1, Cout, HW), lambda n: (n, 0, 0)),
        ),
        compiler_params=pltpu.CompilerParams(
            dimension_semantics=("parallel",)),   # splits batch across the 2 TCs on v7x
    )(x, params)
    return out.reshape(N, Cout, H, W)


def denselayer_ref(x_nchw, w1, b1, w3, b3):
    """Pure-JAX reference mirroring the PyTorch forward."""
    N, Cin, H, W = x_nchw.shape
    x = jnp.transpose(x_nchw, (0, 2, 3, 1))
    c1 = Cin // 2
    m1 = jnp.mean(x[..., :c1], axis=(1, 2), keepdims=True)
    xb = jnp.concatenate([x[..., :c1] - m1, x[..., c1:]], axis=-1)
    y = jnp.maximum(jnp.einsum('nhwc,co->nhwo', xb, w1) + b1, 0.0)
    Cout = y.shape[-1]
    c2 = Cout // 2
    m2 = jnp.mean(y[..., :c2], axis=(1, 2), keepdims=True)
    yb = jnp.concatenate([y[..., :c2] - m2, y[..., c2:]], axis=-1)
    yp = jnp.pad(yb, ((0, 0), (1, 1), (1, 1), (0, 0)))
    w3r = w3.reshape(3, 3, Cout)
    acc = jnp.zeros_like(y)
    for dy in range(3):
        for dx in range(3):
            acc = acc + yp[:, dy:dy + H, dx:dx + W, :] * w3r[dy, dx]
    out = jnp.maximum(acc + b3, 0.0)
    return jnp.transpose(out, (0, 3, 1, 2))


if __name__ == "__main__":
    N, Cin, H, W = 2, 4, 16, 16
    Cout = 8  # even (My_Bn requires an even channel count); default 31 would break torch.split unpack

    key = jax.random.PRNGKey(0)
    kx, kw1, kb1, kw3, kb3 = jax.random.split(key, 5)
    x = jax.random.normal(kx, (N, Cin, H, W), dtype=jnp.float32)
    # compressLayer: Conv2d(cin, cout, 1)  -> weight (Cin, Cout), bias (Cout,)
    w1 = jax.random.normal(kw1, (Cin, Cout), dtype=jnp.float32) * 0.2
    b1 = jax.random.normal(kb1, (Cout,), dtype=jnp.float32) * 0.1
    # actlayer: Conv2d(cout, cout, 3, groups=cout, padding=1) -> depthwise weight (3,3,Cout), bias (Cout,)
    w3 = jax.random.normal(kw3, (3, 3, Cout), dtype=jnp.float32) * 0.2
    b3 = jax.random.normal(kb3, (Cout,), dtype=jnp.float32) * 0.1

    out = jax.block_until_ready(denselayer_forward(x, w1, b1, w3, b3))
    ref = jax.block_until_ready(denselayer_ref(x, w1, b1, w3, b3))

    assert out.shape == (N, Cout, H, W), out.shape
    np.testing.assert_allclose(np.asarray(out), np.asarray(ref), rtol=1e-5, atol=1e-5)
    print("KERNEL_OK")
</pallas_src>

<mosaic_0001>
module attributes {stable_mosaic.version = 11 : i64} {
  func.func @denselayer_kernel(%arg0: i32, %arg1: memref<1x4x256xf32, #tpu.memory_space<vmem>>, %arg2: memref<8x15xf32, #tpu.memory_space<vmem>>, %arg3: memref<1x8x256xf32, #tpu.memory_space<vmem>>) attributes {dimension_semantics = [#tpu.dimension_semantics<parallel>], iteration_bounds = array<i64: 2>, scalar_prefetch = 0 : i64, scratch_operands = 0 : i64, tpu.core_type = #tpu.core_type<tc>, window_params = [{transform_indices = @transform_0, window_bounds = array<i64: 1, 4, 256>}, {pipeline_mode = #tpu.pipeline_mode<synchronous>, transform_indices = @transform_1, window_bounds = array<i64: 8, 15>}, {transform_indices = @transform_2, window_bounds = array<i64: 1, 8, 256>}]} {
    %c0 = arith.constant 0 : index
    %c0_0 = arith.constant 0 : index
    %c0_1 = arith.constant 0 : index
    %0 = vector.load %arg1[%c0, %c0_0, %c0_1] : memref<1x4x256xf32, #tpu.memory_space<vmem>>, vector<1x4x256xf32>
    %1 = vector.shape_cast %0 : vector<1x4x256xf32> to vector<4x256xf32>
    %c0_2 = arith.constant 0 : index
    %c0_3 = arith.constant 0 : index
    %2 = vector.load %arg2[%c0_2, %c0_3] : memref<8x15xf32, #tpu.memory_space<vmem>>, vector<8x15xf32>
    %3 = vector.extract_strided_slice %2 {offsets = [0, 0], sizes = [8, 4], strides = [1, 1]} : vector<8x15xf32> to vector<8x4xf32>
    %4 = vector.extract_strided_slice %2 {offsets = [0, 4], sizes = [8, 1], strides = [1, 1]} : vector<8x15xf32> to vector<8x1xf32>
    %5 = vector.extract_strided_slice %2 {offsets = [0, 14], sizes = [8, 1], strides = [1, 1]} : vector<8x15xf32> to vector<8x1xf32>
    %6 = vector.extract_strided_slice %1 {offsets = [0, 0], sizes = [2, 256], strides = [1, 1]} : vector<4x256xf32> to vector<2x256xf32>
    %cst = arith.constant dense<0.000000e+00> : vector<2xf32>
    %7 = vector.multi_reduction <add>, %6, %cst [1] : vector<2x256xf32> to vector<2xf32>
    %8 = vector.shape_cast %7 : vector<2xf32> to vector<2x1xf32>
    %cst_4 = arith.constant 2.560000e+02 : f32
    %9 = vector.broadcast %cst_4 : f32 to vector<2x1xf32>
    %10 = arith.divf %8, %9 : vector<2x1xf32>
    %11 = vector.extract_strided_slice %3 {offsets = [0, 0], sizes = [8, 1], strides = [1, 1]} : vector<8x4xf32> to vector<8x1xf32>
    %12 = vector.extract_strided_slice %10 {offsets = [0, 0], sizes = [1, 1], strides = [1, 1]} : vector<2x1xf32> to vector<1x1xf32>
    %13 = vector.broadcast %12 : vector<1x1xf32> to vector<8x1xf32>
    %14 = arith.mulf %11, %13 : vector<8x1xf32>
    %15 = arith.subf %4, %14 : vector<8x1xf32>
    %16 = vector.extract_strided_slice %3 {offsets = [0, 1], sizes = [8, 1], strides = [1, 1]} : vector<8x4xf32> to vector<8x1xf32>
    %17 = vector.extract_strided_slice %10 {offsets = [1, 0], sizes = [1, 1], strides = [1, 1]} : vector<2x1xf32> to vector<1x1xf32>
    %18 = vector.broadcast %17 : vector<1x1xf32> to vector<8x1xf32>
    %19 = arith.mulf %16, %18 : vector<8x1xf32>
    %20 = arith.subf %15, %19 : vector<8x1xf32>
    %21 = vector.extract_strided_slice %3 {offsets = [0, 0], sizes = [8, 1], strides = [1, 1]} : vector<8x4xf32> to vector<8x1xf32>
    %22 = vector.extract_strided_slice %1 {offsets = [0, 0], sizes = [1, 256], strides = [1, 1]} : vector<4x256xf32> to vector<1x256xf32>
    %23 = vector.broadcast %21 : vector<8x1xf32> to vector<8x256xf32>
    %24 = vector.broadcast %22 : vector<1x256xf32> to vector<8x256xf32>
    %25 = arith.mulf %23, %24 : vector<8x256xf32>
    %26 = vector.broadcast %20 : vector<8x1xf32> to vector<8x256xf32>
    %27 = arith.addf %25, %26 : vector<8x256xf32>
    %28 = vector.extract_strided_slice %3 {offsets = [0, 1], sizes = [8, 1], strides = [1, 1]} : vector<8x4xf32> to vector<8x1xf32>
    %29 = vector.extract_strided_slice %1 {offsets = [1, 0], sizes = [1, 256], strides = [1, 1]} : vector<4x256xf32> to vector<1x256xf32>
    %30 = vector.broadcast %28 : vector<8x1xf32> to vector<8x256xf32>
    %31 = vector.broadcast %29 : vector<1x256xf32> to vector<8x256xf32>
    %32 = arith.mulf %30, %31 : vector<8x256xf32>
    %33 = arith.addf %27, %32 : vector<8x256xf32>
    %34 = vector.extract_strided_slice %3 {offsets = [0, 2], sizes = [8, 1], strides = [1, 1]} : vector<8x4xf32> to vector<8x1xf32>
    %35 = vector.extract_strided_slice %1 {offsets = [2, 0], sizes = [1, 256], strides = [1, 1]} : vector<4x256xf32> to vector<1x256xf32>
    %36 = vector.broadcast %34 : vector<8x1xf32> to vector<8x256xf32>
    %37 = vector.broadcast %35 : vector<1x256xf32> to vector<8x256xf32>
    %38 = arith.mulf %36, %37 : vector<8x256xf32>
    %39 = arith.addf %33, %38 : vector<8x256xf32>
    %40 = vector.extract_strided_slice %3 {offsets = [0, 3], sizes = [8, 1], strides = [1, 1]} : vector<8x4xf32> to vector<8x1xf32>
    %41 = vector.extract_strided_slice %1 {offsets = [3, 0], sizes = [1, 256], strides = [1, 1]} : vector<4x256xf32> to vector<1x256xf32>
    %42 = vector.broadcast %40 : vector<8x1xf32> to vector<8x256xf32>
    %43 = vector.broadcast %41 : vector<1x256xf32> to vector<8x256xf32>
    %44 = arith.mulf %42, %43 : vector<8x256xf32>
    %45 = arith.addf %39, %44 : vector<8x256xf32>
    %cst_5 = arith.constant 0.000000e+00 : f32
    %46 = vector.broadcast %cst_5 : f32 to vector<8x256xf32>
    %47 = arith.maximumf %45, %46 : vector<8x256xf32>
    %cst_6 = arith.constant dense<0.000000e+00> : vector<8xf32>
    %48 = vector.multi_reduction <add>, %47, %cst_6 [1] : vector<8x256xf32> to vector<8xf32>
    %49 = vector.shape_cast %48 : vector<8xf32> to vector<8x1xf32>
    %cst_7 = arith.constant 2.560000e+02 : f32
    %50 = vector.broadcast %cst_7 : f32 to vector<8x1xf32>
    %51 = arith.divf %49, %50 : vector<8x1xf32>
    %52 = tpu.iota {dimensions = array<i32: 0>} : vector<8x1xi32>
    %c4_i32 = arith.constant 4 : i32
    %53 = vector.broadcast %c4_i32 : i32 to vector<8x1xi32>
    %54 = arith.cmpi slt, %52, %53 : vector<8x1xi32>
    %cst_8 = arith.constant 0.000000e+00 : f32
    %55 = vector.broadcast %cst_8 : f32 to vector<8x1xf32>
    %56 = arith.select %54, %51, %55 : vector<8x1xi1>, vector<8x1xf32>
    %57 = vector.broadcast %56 : vector<8x1xf32> to vector<8x256xf32>
    %58 = arith.subf %47, %57 : vector<8x256xf32>
    %59 = tpu.iota {dimensions = array<i32: 1>} : vector<1x256xi32>
    %c15_i32 = arith.constant 15 : i32
    %60 = vector.broadcast %c15_i32 : i32 to vector<1x256xi32>
    %61 = arith.andi %59, %60 : vector<1x256xi32>
    %c16_i32 = arith.constant 16 : i32
    %62 = vector.broadcast %c16_i32 : i32 to vector<1x256xi32>
    %63 = arith.cmpi sge, %59, %62 : vector<1x256xi32>
    %c240_i32 = arith.constant 240 : i32
    %64 = vector.broadcast %c240_i32 : i32 to vector<1x256xi32>
    %65 = arith.cmpi slt, %59, %64 : vector<1x256xi32>
    %c1_i32 = arith.constant 1 : i32
    %66 = vector.broadcast %c1_i32 : i32 to vector<1x256xi32>
    %67 = arith.cmpi sge, %61, %66 : vector<1x256xi32>
    %c14_i32 = arith.constant 14 : i32
    %68 = vector.broadcast %c14_i32 : i32 to vector<1x256xi32>
    %69 = arith.cmpi sle, %61, %68 : vector<1x256xi32>
    %70 = vector.extract_strided_slice %2 {offsets = [0, 9], sizes = [8, 1], strides = [1, 1]} : vector<8x15xf32> to vector<8x1xf32>
    %71 = vector.broadcast %70 : vector<8x1xf32> to vector<8x256xf32>
    %72 = arith.mulf %58, %71 : vector<8x256xf32>
    %c17_i32 = arith.constant 17 : i32
    %73 = tpu.dynamic_rotate %58 by %c17_i32 dim 1 : vector<8x256xf32>, i32 -> vector<8x256xf32>
    %74 = arith.andi %63, %67 : vector<1x256xi1>
    %cst_9 = arith.constant 0.000000e+00 : f32
    %75 = vector.shape_cast %74 : vector<1x256xi1> to vector<1x256xi1>
    %76 = vector.broadcast %75 : vector<1x256xi1> to vector<8x256xi1>
    %77 = vector.broadcast %cst_9 : f32 to vector<8x256xf32>
    %78 = arith.select %76, %73, %77 : vector<8x256xi1>, vector<8x256xf32>
    %79 = vector.extract_strided_slice %2 {offsets = [0, 5], sizes = [8, 1], strides = [1, 1]} : vector<8x15xf32> to vector<8x1xf32>
    %80 = vector.broadcast %79 : vector<8x1xf32> to vector<8x256xf32>
    %81 = arith.mulf %78, %80 : vector<8x256xf32>
    %82 = arith.addf %72, %81 : vector<8x256xf32>
    %c16_i32_10 = arith.constant 16 : i32
    %83 = tpu.dynamic_rotate %58 by %c16_i32_10 dim 1 : vector<8x256xf32>, i32 -> vector<8x256xf32>
    %cst_11 = arith.constant 0.000000e+00 : f32
    %84 = vector.shape_cast %63 : vector<1x256xi1> to vector<1x256xi1>
    %85 = vector.broadcast %84 : vector<1x256xi1> to vector<8x256xi1>
    %86 = vector.broadcast %cst_11 : f32 to vector<8x256xf32>
    %87 = arith.select %85, %83, %86 : vector<8x256xi1>, vector<8x256xf32>
    %88 = vector.extract_strided_slice %2 {offsets = [0, 6], sizes = [8, 1], strides = [1, 1]} : vector<8x15xf32> to vector<8x1xf32>
    %89 = vector.broadcast %88 : vector<8x1xf32> to vector<8x256xf32>
    %90 = arith.mulf %87, %89 : vector<8x256xf32>
    %91 = arith.addf %82, %90 : vector<8x256xf32>
    %c15_i32_12 = arith.constant 15 : i32
    %92 = tpu.dynamic_rotate %58 by %c15_i32_12 dim 1 : vector<8x256xf32>, i32 -> vector<8x256xf32>
    %93 = arith.andi %63, %69 : vector<1x256xi1>
    %cst_13 = arith.constant 0.000000e+00 : f32
    %94 = vector.shape_cast %93 : vector<1x256xi1> to vector<1x256xi1>
    %95 = vector.broadcast %94 : vector<1x256xi1> to vector<8x256xi1>
    %96 = vector.broadcast %cst_13 : f32 to vector<8x256xf32>
    %97 = arith.select %95, %92, %96 : vector<8x256xi1>, vector<8x256xf32>
    %98 = vector.extract_strided_slice %2 {offsets = [0, 7], sizes = [8, 1], strides = [1, 1]} : vector<8x15xf32> to vector<8x1xf32>
    %99 = vector.broadcast %98 : vector<8x1xf32> to vector<8x256xf32>
    %100 = arith.mulf %97, %99 : vector<8x256xf32>
    %101 = arith.addf %91, %100 : vector<8x256xf32>
    %c1_i32_14 = arith.constant 1 : i32
    %102 = tpu.dynamic_rotate %58 by %c1_i32_14 dim 1 : vector<8x256xf32>, i32 -> vector<8x256xf32>
    %cst_15 = arith.constant 0.000000e+00 : f32
    %103 = vector.shape_cast %67 : vector<1x256xi1> to vector<1x256xi1>
    %104 = vector.broadcast %103 : vector<1x256xi1> to vector<8x256xi1>
    %105 = vector.broadcast %cst_15 : f32 to vector<8x256xf32>
    %106 = arith.select %104, %102, %105 : vector<8x256xi1>, vector<8x256xf32>
    %107 = vector.extract_strided_slice %2 {offsets = [0, 8], sizes = [8, 1], strides = [1, 1]} : vector<8x15xf32> to vector<8x1xf32>
    %108 = vector.broadcast %107 : vector<8x1xf32> to vector<8x256xf32>
    %109 = arith.mulf %106, %108 : vector<8x256xf32>
    %110 = arith.addf %101, %109 : vector<8x256xf32>
    %c255_i32 = arith.constant 255 : i32
    %111 = tpu.dynamic_rotate %58 by %c255_i32 dim 1 : vector<8x256xf32>, i32 -> vector<8x256xf32>
    %cst_16 = arith.constant 0.000000e+00 : f32
    %112 = vector.shape_cast %69 : vector<1x256xi1> to vector<1x256xi1>
    %113 = vector.broadcast %112 : vector<1x256xi1> to vector<8x256xi1>
    %114 = vector.broadcast %cst_16 : f32 to vector<8x256xf32>
    %115 = arith.select %113, %111, %114 : vector<8x256xi1>, vector<8x256xf32>
    %116 = vector.extract_strided_slice %2 {offsets = [0, 10], sizes = [8, 1], strides = [1, 1]} : vector<8x15xf32> to vector<8x1xf32>
    %117 = vector.broadcast %116 : vector<8x1xf32> to vector<8x256xf32>
    %118 = arith.mulf %115, %117 : vector<8x256xf32>
    %119 = arith.addf %110, %118 : vector<8x256xf32>
    %c241_i32 = arith.constant 241 : i32
    %120 = tpu.dynamic_rotate %58 by %c241_i32 dim 1 : vector<8x256xf32>, i32 -> vector<8x256xf32>
    %121 = arith.andi %65, %67 : vector<1x256xi1>
    %cst_17 = arith.constant 0.000000e+00 : f32
    %122 = vector.shape_cast %121 : vector<1x256xi1> to vector<1x256xi1>
    %123 = vector.broadcast %122 : vector<1x256xi1> to vector<8x256xi1>
    %124 = vector.broadcast %cst_17 : f32 to vector<8x256xf32>
    %125 = arith.select %123, %120, %124 : vector<8x256xi1>, vector<8x256xf32>
    %126 = vector.extract_strided_slice %2 {offsets = [0, 11], sizes = [8, 1], strides = [1, 1]} : vector<8x15xf32> to vector<8x1xf32>
    %127 = vector.broadcast %126 : vector<8x1xf32> to vector<8x256xf32>
    %128 = arith.mulf %125, %127 : vector<8x256xf32>
    %129 = arith.addf %119, %128 : vector<8x256xf32>
    %c240_i32_18 = arith.constant 240 : i32
    %130 = tpu.dynamic_rotate %58 by %c240_i32_18 dim 1 : vector<8x256xf32>, i32 -> vector<8x256xf32>
    %cst_19 = arith.constant 0.000000e+00 : f32
    %131 = vector.shape_cast %65 : vector<1x256xi1> to vector<1x256xi1>
    %132 = vector.broadcast %131 : vector<1x256xi1> to vector<8x256xi1>
    %133 = vector.broadcast %cst_19 : f32 to vector<8x256xf32>
    %134 = arith.select %132, %130, %133 : vector<8x256xi1>, vector<8x256xf32>
    %135 = vector.extract_strided_slice %2 {offsets = [0, 12], sizes = [8, 1], strides = [1, 1]} : vector<8x15xf32> to vector<8x1xf32>
    %136 = vector.broadcast %135 : vector<8x1xf32> to vector<8x256xf32>
    %137 = arith.mulf %134, %136 : vector<8x256xf32>
    %138 = arith.addf %129, %137 : vector<8x256xf32>
    %c239_i32 = arith.constant 239 : i32
    %139 = tpu.dynamic_rotate %58 by %c239_i32 dim 1 : vector<8x256xf32>, i32 -> vector<8x256xf32>
    %140 = arith.andi %65, %69 : vector<1x256xi1>
    %cst_20 = arith.constant 0.000000e+00 : f32
    %141 = vector.shape_cast %140 : vector<1x256xi1> to vector<1x256xi1>
    %142 = vector.broadcast %141 : vector<1x256xi1> to vector<8x256xi1>
    %143 = vector.broadcast %cst_20 : f32 to vector<8x256xf32>
    %144 = arith.select %142, %139, %143 : vector<8x256xi1>, vector<8x256xf32>
    %145 = vector.extract_strided_slice %2 {offsets = [0, 13], sizes = [8, 1], strides = [1, 1]} : vector<8x15xf32> to vector<8x1xf32>
    %146 = vector.broadcast %145 : vector<8x1xf32> to vector<8x256xf32>
    %147 = arith.mulf %144, %146 : vector<8x256xf32>
    %148 = arith.addf %138, %147 : vector<8x256xf32>
    %149 = vector.broadcast %5 : vector<8x1xf32> to vector<8x256xf32>
    %150 = arith.addf %148, %149 : vector<8x256xf32>
    %cst_21 = arith.constant 0.000000e+00 : f32
    %151 = vector.broadcast %cst_21 : f32 to vector<8x256xf32>
    %152 = arith.maximumf %150, %151 : vector<8x256xf32>
    %c0_22 = arith.constant 0 : index
    %c0_23 = arith.constant 0 : index
    %c0_24 = arith.constant 0 : index
    %153 = vector.load %arg3[%c0_22, %c0_23, %c0_24] : memref<1x8x256xf32, #tpu.memory_space<vmem>>, vector<1x8x256xf32>
    %154 = vector.shape_cast %153 : vector<1x8x256xf32> to vector<8x256xf32>
    %155 = vector.shape_cast %152 : vector<8x256xf32> to vector<1x8x256xf32>
    tpu.vector_store %arg3[%c0_22, %c0_23, %c0_24], %155 {strides = array<i32>} : memref<1x8x256xf32, #tpu.memory_space<vmem>>, vector<1x8x256xf32>,
    return
  }
  func.func @transform_0(%arg0: i32) -> (i32, i32, i32) {
    %c0_i32 = arith.constant 0 : i32
    %c0_i32_0 = arith.constant 0 : i32
    %c0_i32_1 = arith.constant 0 : i32
    return %arg0, %c0_i32, %c0_i32_0 : i32, i32, i32
  }
  func.func @transform_1(%arg0: i32) -> (i32, i32) {
    %c0_i32 = arith.constant 0 : i32
    %c0_i32_0 = arith.constant 0 : i32
    %c0_i32_1 = arith.constant 0 : i32
    return %c0_i32, %c0_i32_0 : i32, i32
  }
  func.func @transform_2(%arg0: i32) -> (i32, i32, i32) {
    %c0_i32 = arith.constant 0 : i32
    %c0_i32_0 = arith.constant 0 : i32
    %c0_i32_1 = arith.constant 0 : i32
    return %arg0, %c0_i32, %c0_i32_0 : i32, i32, i32
  }
}

</mosaic_0001>

<llo_original>
// kernel: tpu_custom_call.1
$region0: #{tpu_custom_call.1}
  #allocation0 [shape = 'u32[]', space=smem, size = 0x4, offset = 0x4, fixed_abs, tag = 'smem constant byte address 0x4 - core index']
  #allocation1 [shape = 'u32[144,128]{1,0:T(1,128)}', space=vmem, size = 0x12000, scoped, tag = 'internal scratch']
  %s0 = inlined_call_operand.hbm [shape: f32[2,4,256], index: 0, kind: input, shape index: {}]
  %s1 = inlined_call_operand.hbm [shape: f32[8,15], index: 1, kind: input, shape index: {}]
  %s2 = inlined_call_operand.hbm [shape: f32[2,8,256], index: 2, kind: output, shape index: {}]
  %s3 = sld [smem:[#allocation0]]
  $region49: #{tpu_custom_call.1} parent=0
    _
  %s5 = ssub.s32 1, %s3
  %s6 = scalar_select 0, %s5, %s3
  $region1: #{tpu_custom_call.1} parent=0
    #allocation2 [shape = 'u8[8192]{0}', space=vmem, size = 0x2000, scoped, tag = 'input window, operand 0']
    #allocation3 [shape = 's32[2]{0}', space=sflag, size = 0x8, scoped, tag = 'scoped memory for tpu_custom_call.1']
    #allocation4 [shape = 's32[2]{0}', space=sflag, size = 0x8, scoped, tag = 'scoped memory for tpu_custom_call.1']
    #allocation5 [shape = 'u8[4096]{0}', space=vmem, size = 0x1000, scoped, tag = 'input window, operand 1, single buffered']
    #allocation6 [shape = 's32[1]{0}', space=sflag, size = 0x4, scoped, tag = 'scoped memory for tpu_custom_call.1']
    #allocation7 [shape = 'u8[16384]{0}', space=vmem, size = 0x4000, scoped, tag = 'output window, operand 0']
    %7 = vsyncpa [#allocation3], 0
    %s8 = scalar_lea.sflag [#allocation3], 1
    %9 = vsyncpa %s8, 0
    %10 = vsyncpa [#allocation6], 0
    %11 = vsyncpa [#allocation4], 0
    %s12 = scalar_lea.sflag [#allocation4], 1
    %13 = vsyncpa %s12, 0
    loop: start=0, step=1, limit=4
    $region2: #{tpu_custom_call.1} parent=1 // loop_pre_header
      _
    $region3: #{tpu_custom_call.1} parent=1 // loop_header
      %s15 = sphi 0, %s19
      %p16 = scmp.ge.s32.totalorder %s15, 4
      %s25 = sphi 0, %s27
      %s28 = sphi 0, %s25
      %s29 = sphi 0, %s28
      %s45 = sphi 0, %s29
      %s49 = sphi 0, %s49
      %s51 = sphi 0, %s49
      %s52 = sphi 0, %s51
      %s66 = sphi 0, %s52
      %s72 = sphi 0, %s74
      %s75 = sphi 0, %s72
      %s76 = sphi 0, %s75
      %s92 = sphi 0, %s76
    $region4: #{tpu_custom_call.1} parent=1 // loop_header_branch
      %18 = sbr.rel (%p16) target = $region8
    $region5: #{tpu_custom_call.1} parent=1 // loop_body
      %s20 = ssub.s32 %s15, 1
      %s21 = ssub.s32 %s15, 2
      %s22 = sadd.s32 %s15, 1
      %s23 = ssub.s32 %s15, %s22
      %p24 = scmp.eq.s32.totalorder %s23, 0
      %s26 = sadd.s32 %s25, 1
      %s27 = scalar_select %p24, %s25, %s26
      %p30 = pneg %p24
      %p31 = scmp.eq.s32.totalorder %s15, 1
      %p32 = por %p30, %p31
      %p33 = scmp.ne.s32.totalorder %s25, %s28
      %p34 = scmp.eq.s32.totalorder %s15, 0
      %p35 = por %p33, %p34
      %p36 = scmp.ne.s32.totalorder %s25, %s28
      %p37 = scmp.eq.s32.totalorder %s20, 1
      %p38 = por %p36, %p37
      %p39 = scmp.ne.s32.totalorder %s28, %s29
      %p40 = scmp.eq.s32.totalorder %s20, 0
      %p41 = por %p39, %p40
      %p42 = scmp.ne.s32.totalorder %s28, %s29
      %p43 = scmp.eq.s32.totalorder %s21, 1
      %p44 = por %p42, %p43
      %p46 = scmp.ne.s32.totalorder %s29, %s45
      %p47 = scmp.eq.s32.totalorder %s21, 0
      %p48 = por %p46, %p47
      %s50 = sadd.s32 %s49, 1
      %p53 = scmp.eq.s32.totalorder %s15, 1
      %p54 = scmp.ne.s32.totalorder %s49, %s51
      %p55 = scmp.eq.s32.totalorder %s15, 0
      %p56 = por %p54, %p55
      %p57 = scmp.ne.s32.totalorder %s49, %s51
      %p58 = scmp.eq.s32.totalorder %s20, 1
      %p59 = por %p57, %p58
      %p60 = scmp.ne.s32.totalorder %s51, %s52
      %p61 = scmp.eq.s32.totalorder %s20, 0
      %p62 = por %p60, %p61
      %p63 = scmp.ne.s32.totalorder %s51, %s52
      %p64 = scmp.eq.s32.totalorder %s21, 1
      %p65 = por %p63, %p64
      %p67 = scmp.ne.s32.totalorder %s52, %s66
      %p68 = scmp.eq.s32.totalorder %s21, 0
      %p69 = por %p67, %p68
      %s70 = ssub.s32 %s15, %s22
      %p71 = scmp.eq.s32.totalorder %s70, 0
      %s73 = sadd.s32 %s72, 1
      %s74 = scalar_select %p71, %s72, %s73
      %p77 = pneg %p71
      %p78 = scmp.eq.s32.totalorder %s15, 1
      %p79 = por %p77, %p78
      %p80 = scmp.ne.s32.totalorder %s72, %s75
      %p81 = scmp.eq.s32.totalorder %s15, 0
      %p82 = por %p80, %p81
      %p83 = scmp.ne.s32.totalorder %s72, %s75
      %p84 = scmp.eq.s32.totalorder %s20, 1
      %p85 = por %p83, %p84
      %p86 = scmp.ne.s32.totalorder %s75, %s76
      %p87 = scmp.eq.s32.totalorder %s20, 0
      %p88 = por %p86, %p87
      %p89 = scmp.ne.s32.totalorder %s75, %s76
      %p90 = scmp.eq.s32.totalorder %s21, 1
      %p91 = por %p89, %p90
      %p93 = scmp.ne.s32.totalorder %s76, %s92
      %p94 = scmp.eq.s32.totalorder %s21, 0
      %p95 = por %p93, %p94
      %p96 = scmp.le.s32.totalorder 1, %s15
      %p97 = scmp.lt.s32.totalorder %s15, 3
      %p98 = pnand %p96, %p97
      %p99 = pneg %p98
      // Predicated region
      $region9: #{tpu_custom_call.1} parent=5 // pred_check
        _
      $region10: #{tpu_custom_call.1} parent=5 // pred_check_branch
        %101 = sbr.rel (%p98) target = $region12
      $region11: #{tpu_custom_call.1} parent=5 // pred_region
        %s102 = ssub.s32 %s15, 1
        // Predicated region
        $region13: #{tpu_custom_call.1} parent=11 // pred_check
          %p103 = pneg %p62
        $region14: #{tpu_custom_call.1} parent=11 // pred_check_branch
          %105 = sbr.rel (%p103) target = $region16
        $region15: #{tpu_custom_call.1} parent=11 // pred_region
          %s107 = ssub.s32 128, 128
          %108 = vsyncadd [#allocation6], %s107
          %s110 = sshll.u32 [#allocation5], 4
          %s111 = int_to_ptr.vmem [resolvable:$true] %s110
          %113 = dma.hbm_to_vmem [thread:$0]  %s1, 128, %s111, [#allocation6]
        $region16: #{tpu_custom_call.1} parent=11 // pred_fallthru
          _
      $region12: #{tpu_custom_call.1} parent=5 // pred_fallthru
        _
      %p114 = scmp.lt.s32.totalorder %s15, 2
      // Predicated region
      $region17: #{tpu_custom_call.1} parent=5 // pred_check
        %p115 = pneg %p114
      $region18: #{tpu_custom_call.1} parent=5 // pred_check_branch
        %117 = sbr.rel (%p115) target = $region20
      $region19: #{tpu_custom_call.1} parent=5 // pred_region
        // Predicated region
        $region21: #{tpu_custom_call.1} parent=19 // pred_check
          %p118 = pneg %p35
        $region22: #{tpu_custom_call.1} parent=19 // pred_check_branch
          %120 = sbr.rel (%p118) target = $region24
        $region23: #{tpu_custom_call.1} parent=19 // pred_region
          %s121 = sand.u32 %s25, 1
          %s122 = scalar_lea.sflag [#allocation3], %s121
          %s123 = sand.u32 %s25, 1
          %s124 = smul.addr %s123, 8
          %s125 = scalar_lea.vmem [#allocation2], %s124
          %s127 = ssub.s32 128, 128
          %128 = vsyncadd %s122, %s127
          %s129 = smul.addr %s15, 2
          %s130 = smul.addr %s129, 64
          %s131 = scalar_lea.hbm %s0, %s130
          %s133 = sshll.u32 %s125, 4
          %s134 = int_to_ptr.vmem [resolvable:$true] %s133
          %136 = dma.hbm_to_vmem [thread:$0]  %s131, 128, %s134, %s122
        $region24: #{tpu_custom_call.1} parent=19 // pred_fallthru
          _
      $region20: #{tpu_custom_call.1} parent=5 // pred_fallthru
        _
      %p137 = scmp.le.s32.totalorder 1, %s15
      %p138 = scmp.lt.s32.totalorder %s15, 3
      %p139 = pnand %p137, %p138
      %p140 = pneg %p139
      // Predicated region
      $region25: #{tpu_custom_call.1} parent=5 // pred_check
        _
      $region26: #{tpu_custom_call.1} parent=5 // pred_check_branch
        %142 = sbr.rel (%p139) target = $region28
      $region27: #{tpu_custom_call.1} parent=5 // pred_region
        %s143 = ssub.s32 %s15, 1
        %s144 = sand.u32 %s28, 1
        %s145 = scalar_lea.sflag [#allocation3], %s144
        %s146 = sand.u32 %s28, 1
        %s147 = smul.addr %s146, 8
        %s148 = scalar_lea.vmem [#allocation2], %s147
        // Predicated region
        $region29: #{tpu_custom_call.1} parent=27 // pred_check
          %p149 = pneg %p41
        $region30: #{tpu_custom_call.1} parent=27 // pred_check_branch
          %151 = sbr.rel (%p149) target = $region32
        $region31: #{tpu_custom_call.1} parent=27 // pred_region
          %152 = dma.done %s145, 128
        $region32: #{tpu_custom_call.1} parent=27 // pred_fallthru
          _
        // Predicated region
        $region33: #{tpu_custom_call.1} parent=27 // pred_check
          %p153 = pneg %p62
        $region34: #{tpu_custom_call.1} parent=27 // pred_check_branch
          %155 = sbr.rel (%p153) target = $region36
        $region35: #{tpu_custom_call.1} parent=27 // pred_region
          %156 = dma.done [#allocation6], 128
        $region36: #{tpu_custom_call.1} parent=27 // pred_fallthru
          _
        %s157 = sand.u32 %s28, 1
        %s158 = scalar_lea.sflag [#allocation3], %s157
        %s159 = sand.u32 %s28, 1
        %s160 = smul.addr %s159, 8
        %s161 = scalar_lea.vmem [#allocation2], %s160
        %p162 = pneg %p41
        %p163 = pneg %p38
        %p164 = pneg %p62
        %p165 = pneg %p59
        %p166 = pneg %p88
        %p167 = pneg %p85
        %s168 = sand.u32 %s75, 1
        %s169 = scalar_lea.sflag [#allocation4], %s168
        %s170 = sand.u32 %s75, 1
        %s171 = smul.addr %s170, 16
        %s172 = scalar_lea.vmem [#allocation7], %s171
        %v173 = vld [vmem:[%s148] sm:$0xff]
        %v174 = vld [vmem:[#allocation5] sm:$0xff]
        %v176 = vcombine.high %v173, %v173
        %vm178 = vcmask 1041408
        %v179 = vsel %vm178, %v173, 0.0
        %v180 = vsel %vm178, %v176, 0.0
        %v181 = vadd.f32 %v179, %v180
        %182 = vadd.xlane.f32.xlu0 %v181
        %v183 = vpop.xlane.xlu0 %182
        %v184 = vrcp.pop 256.0
        %v185 = vmul.f32 %v183, %v184
        %v186 = vlaneseq
        %v187 = vshrl.u32 %v186, 7
        %v188 = vsub.s32 0, %v187
        %v189 = vrot.slane %v185, %v188
        %v190 = vmul.f32 %v174, %v189
        %192 = vrot.lane.b32.xlu0 %v190, 4
        %v193 = vpop.permute.xlu0 %192
        %v195 = vsub.f32 %v174, %v193
        %v196 = vlaneseq
        %v197 = vshrl.u32 %v196, 7
        %v198 = vsub.s32 1, %v197
        %v199 = vrot.slane %v185, %v198
        %v200 = vmul.f32 %v174, %v199
        %202 = vrot.lane.b32.xlu0 %v200, 3
        %v203 = vpop.permute.xlu0 %202
        %v205 = vsub.f32 %v195, %v203
        %207 = vset.pattern.permute.xlu0 0
        %208 = vperm.xlu0 %207, %v174
        %v209 = vpop.permute.xlu0 %208
        %v211 = vlaneseq
        %v212 = vshrl.u32 %v211, 7
        %v213 = vsub.s32 0, %v212
        %v214 = vrot.slane %v173, %v213
        %v215 = vlaneseq
        %v216 = vshrl.u32 %v215, 7
        %v217 = vsub.s32 4, %v216
        %v218 = vrot.slane %v173, %v217
        %v221 = vlaneseq
        %v222 = vshrl.u32 %v221, 7
        %v223 = vsub.s32 0, %v222
        %v224 = vrot.slane %v214, %v223
        %v225 = vlaneseq
        %v226 = vshrl.u32 %v225, 7
        %v227 = vsub.s32 0, %v226
        %v228 = vrot.slane %v218, %v227
        %v229 = vmul.f32 %v209, %v224
        %v230 = vmul.f32 %v209, %v228
        %232 = vset.pattern.permute.xlu0 4
        %233 = vperm.xlu0 %232, %v205
        %v234 = vpop.permute.xlu0 %233
        %v236 = vadd.f32 %v229, %v234
        %v237 = vadd.f32 %v230, %v234
        %238 = vset.pattern.permute.xlu0 1
        %239 = vperm.xlu0 %238, %v174
        %v240 = vpop.permute.xlu0 %239
        %v242 = vlaneseq
        %v243 = vshrl.u32 %v242, 7
        %v244 = vsub.s32 1, %v243
        %v245 = vrot.slane %v173, %v244
        %v246 = vlaneseq
        %v247 = vshrl.u32 %v246, 7
        %v248 = vsub.s32 5, %v247
        %v249 = vrot.slane %v173, %v248
        %v252 = vlaneseq
        %v253 = vshrl.u32 %v252, 7
        %v254 = vsub.s32 1, %v253
        %v255 = vrot.slane %v245, %v254
        %v256 = vlaneseq
        %v257 = vshrl.u32 %v256, 7
        %v258 = vsub.s32 1, %v257
        %v259 = vrot.slane %v249, %v258
        %v260 = vmul.f32 %v240, %v255
        %v261 = vmul.f32 %v240, %v259
        %v262 = vadd.f32 %v236, %v260
        %v263 = vadd.f32 %v237, %v261
        %264 = vset.pattern.permute.xlu0 2
        %265 = vperm.xlu0 %264, %v174
        %v266 = vpop.permute.xlu0 %265
        %v268 = vlaneseq
        %v269 = vshrl.u32 %v268, 7
        %v270 = vsub.s32 2, %v269
        %v271 = vrot.slane %v173, %v270
        %v272 = vlaneseq
        %v273 = vshrl.u32 %v272, 7
        %v274 = vsub.s32 6, %v273
        %v275 = vrot.slane %v173, %v274
        %v278 = vlaneseq
        %v279 = vshrl.u32 %v278, 7
        %v280 = vsub.s32 2, %v279
        %v281 = vrot.slane %v271, %v280
        %v282 = vlaneseq
        %v283 = vshrl.u32 %v282, 7
        %v284 = vsub.s32 2, %v283
        %v285 = vrot.slane %v275, %v284
        %v286 = vmul.f32 %v266, %v281
        %v287 = vmul.f32 %v266, %v285
        %v288 = vadd.f32 %v262, %v286
        %v289 = vadd.f32 %v263, %v287
        %290 = vset.pattern.permute.xlu0 3
        %291 = vperm.xlu0 %290, %v174
        %v292 = vpop.permute.xlu0 %291
        %v294 = vlaneseq
        %v295 = vshrl.u32 %v294, 7
        %v296 = vsub.s32 3, %v295
        %v297 = vrot.slane %v173, %v296
        %v298 = vlaneseq
        %v299 = vshrl.u32 %v298, 7
        %v300 = vsub.s32 7, %v299
        %v301 = vrot.slane %v173, %v300
        %v304 = vlaneseq
        %v305 = vshrl.u32 %v304, 7
        %v306 = vsub.s32 3, %v305
        %v307 = vrot.slane %v297, %v306
        %v308 = vlaneseq
        %v309 = vshrl.u32 %v308, 7
        %v310 = vsub.s32 3, %v309
        %v311 = vrot.slane %v301, %v310
        %v312 = vmul.f32 %v292, %v307
        %v313 = vmul.f32 %v292, %v311
        %v314 = vadd.f32 %v288, %v312
        %v315 = vadd.f32 %v289, %v313
        %v316 = vmax.f32 %v314, 0.0
        %v317 = vmax.f32 %v315, 0.0
        %v318 = vadd.f32 %v316, %v317
        %319 = vadd.xlane.f32.xlu0 %v318
        %v320 = vpop.xlane.xlu0 %319
        %v321 = vmul.f32 %v320, %v184
        %v322 = vlaneseq
        %v323 = vshrl.u32 %v322, 7
        %vm324 = vcmp.lt.s32.totalorder %v323, 4
        %v325 = vsel %vm324, %v321, 0.0
        %v326 = vsub.f32 %v316, %v325
        %v327 = vsub.f32 %v317, %v325
        %v328 = vlaneseq
        %v329 = vand.u32 %v328, 127
        %v330 = vadd.s32 %v329, 128
        %v331 = vand.u32 %v329, 15
        %v332 = vand.u32 %v330, 15
        %vm333 = vcmp.ge.s32.totalorder %v329, 16
        %vm334 = vcmp.ge.s32.totalorder %v330, 16
        %vm335 = vcmp.lt.s32.totalorder %v329, 240
        %vm336 = vcmp.lt.s32.totalorder %v330, 240
        %vm337 = vcmp.ge.s32.totalorder %v331, 1
        %vm338 = vcmp.ge.s32.totalorder %v332, 1
        %vm339 = vcmp.le.s32.totalorder %v331, 14
        %vm340 = vcmp.le.s32.totalorder %v332, 14
        %341 = vset.pattern.permute.xlu0 9
        %342 = vperm.xlu0 %341, %v174
        %v343 = vpop.permute.xlu0 %342
        %v345 = vmul.f32 %v326, %v343
        %v346 = vmul.f32 %v327, %v343
        %347 = vrot.lane.b32.xlu0 %v326, 17
        %v348 = vpop.permute.xlu0 %347
        %349 = vrot.lane.b32.xlu0 %v327, 17
        %v350 = vpop.permute.xlu0 %349
        %vm351 = vcmp.lt.s32.totalorder %v329, 17
        %v352 = vsel %vm351, %v348, %v350
        %v353 = vsel %vm351, %v350, %v348
        %vm354 = vmand %vm333, %vm337
        %vm355 = vmand %vm334, %vm338
        %v356 = vsel %vm354, 1, 0
        %v357 = vsel %vm355, 1, 0
        %vm358 = vcmp.eq.s32.totalorder %v356, 1
        %vm359 = vcmp.eq.s32.totalorder %v357, 1
        %v360 = vsel %vm358, %v353, 0.0
        %v361 = vsel %vm359, %v352, 0.0
        %362 = vset.pattern.permute.xlu0 5
        %363 = vperm.xlu0 %362, %v174
        %v364 = vpop.permute.xlu0 %363
        %v366 = vmul.f32 %v360, %v364
        %v367 = vmul.f32 %v361, %v364
        %v368 = vadd.f32 %v345, %v366
        %v369 = vadd.f32 %v346, %v367
        %370 = vrot.lane.b32.xlu0 %v326, 16
        %v371 = vpop.permute.xlu0 %370
        %372 = vrot.lane.b32.xlu0 %v327, 16
        %v373 = vpop.permute.xlu0 %372
        %vm374 = vcmp.lt.s32.totalorder %v329, 16
        %v375 = vsel %vm374, %v371, %v373
        %v376 = vsel %vm374, %v373, %v371
        %v377 = vsel %vm333, 1, 0
        %v378 = vsel %vm334, 1, 0
        %vm379 = vcmp.eq.s32.totalorder %v377, 1
        %vm380 = vcmp.eq.s32.totalorder %v378, 1
        %v381 = vsel %vm379, %v376, 0.0
        %v382 = vsel %vm380, %v375, 0.0
        %383 = vset.pattern.permute.xlu0 6
        %384 = vperm.xlu0 %383, %v174
        %v385 = vpop.permute.xlu0 %384
        %v387 = vmul.f32 %v381, %v385
        %v388 = vmul.f32 %v382, %v385
        %v389 = vadd.f32 %v368, %v387
        %v390 = vadd.f32 %v369, %v388
        %391 = vrot.lane.b32.xlu0 %v326, 15
        %v392 = vpop.permute.xlu0 %391
        %393 = vrot.lane.b32.xlu0 %v327, 15
        %v394 = vpop.permute.xlu0 %393
        %vm395 = vcmp.lt.s32.totalorder %v329, 15
        %v396 = vsel %vm395, %v392, %v394
        %v397 = vsel %vm395, %v394, %v392
        %vm398 = vmand %vm333, %vm339
        %vm399 = vmand %vm334, %vm340
        %v400 = vsel %vm398, 1, 0
        %v401 = vsel %vm399, 1, 0
        %vm402 = vcmp.eq.s32.totalorder %v400, 1
        %vm403 = vcmp.eq.s32.totalorder %v401, 1
        %v404 = vsel %vm402, %v397, 0.0
        %v405 = vsel %vm403, %v396, 0.0
        %406 = vset.pattern.permute.xlu0 7
        %407 = vperm.xlu0 %406, %v174
        %v408 = vpop.permute.xlu0 %407
        %v410 = vmul.f32 %v404, %v408
        %v411 = vmul.f32 %v405, %v408
        %v412 = vadd.f32 %v389, %v410
        %v413 = vadd.f32 %v390, %v411
        %414 = vrot.lane.b32.xlu0 %v326, 1
        %v415 = vpop.permute.xlu0 %414
        %416 = vrot.lane.b32.xlu0 %v327, 1
        %v417 = vpop.permute.xlu0 %416
        %vm418 = vcmp.lt.s32.totalorder %v329, 1
        %v419 = vsel %vm418, %v415, %v417
        %v420 = vsel %vm418, %v417, %v415
        %v421 = vsel %vm337, 1, 0
        %v422 = vsel %vm338, 1, 0
        %vm423 = vcmp.eq.s32.totalorder %v421, 1
        %vm424 = vcmp.eq.s32.totalorder %v422, 1
        %v425 = vsel %vm423, %v420, 0.0
        %v426 = vsel %vm424, %v419, 0.0
        %427 = vset.pattern.permute.xlu0 8
        %428 = vperm.xlu0 %427, %v174
        %v429 = vpop.permute.xlu0 %428
        %v431 = vmul.f32 %v425, %v429
        %v432 = vmul.f32 %v426, %v429
        %v433 = vadd.f32 %v412, %v431
        %v434 = vadd.f32 %v413, %v432
        %435 = vrot.lane.b32.xlu0 %v326, 127
        %v436 = vpop.permute.xlu0 %435
        %437 = vrot.lane.b32.xlu0 %v327, 127
        %v438 = vpop.permute.xlu0 %437
        %vm439 = vcmp.lt.s32.totalorder %v329, 127
        %v440 = vsel %vm439, %v436, %v438
        %v441 = vsel %vm439, %v438, %v436
        %v442 = vsel %vm339, 1, 0
        %v443 = vsel %vm340, 1, 0
        %vm444 = vcmp.eq.s32.totalorder %v442, 1
        %vm445 = vcmp.eq.s32.totalorder %v443, 1
        %v446 = vsel %vm444, %v440, 0.0
        %v447 = vsel %vm445, %v441, 0.0
        %448 = vset.pattern.permute.xlu0 10
        %449 = vperm.xlu0 %448, %v174
        %v450 = vpop.permute.xlu0 %449
        %v452 = vmul.f32 %v446, %v450
        %v453 = vmul.f32 %v447, %v450
        %v454 = vadd.f32 %v433, %v452
        %v455 = vadd.f32 %v434, %v453
        %456 = vrot.lane.b32.xlu0 %v326, 113
        %v457 = vpop.permute.xlu0 %456
        %458 = vrot.lane.b32.xlu0 %v327, 113
        %v459 = vpop.permute.xlu0 %458
        %vm460 = vcmp.lt.s32.totalorder %v329, 113
        %v461 = vsel %vm460, %v457, %v459
        %v462 = vsel %vm460, %v459, %v457
        %vm463 = vmand %vm335, %vm337
        %vm464 = vmand %vm336, %vm338
        %v465 = vsel %vm463, 1, 0
        %v466 = vsel %vm464, 1, 0
        %vm467 = vcmp.eq.s32.totalorder %v465, 1
        %vm468 = vcmp.eq.s32.totalorder %v466, 1
        %v469 = vsel %vm467, %v461, 0.0
        %v470 = vsel %vm468, %v462, 0.0
        %471 = vset.pattern.permute.xlu0 11
        %472 = vperm.xlu0 %471, %v174
        %v473 = vpop.permute.xlu0 %472
        %v475 = vmul.f32 %v469, %v473
        %v476 = vmul.f32 %v470, %v473
        %v477 = vadd.f32 %v454, %v475
        %v478 = vadd.f32 %v455, %v476
        %479 = vrot.lane.b32.xlu0 %v326, 112
        %v480 = vpop.permute.xlu0 %479
        %481 = vrot.lane.b32.xlu0 %v327, 112
        %v482 = vpop.permute.xlu0 %481
        %vm483 = vcmp.lt.s32.totalorder %v329, 112
        %v484 = vsel %vm483, %v480, %v482
        %v485 = vsel %vm483, %v482, %v480
        %v486 = vsel %vm335, 1, 0
        %v487 = vsel %vm336, 1, 0
        %vm488 = vcmp.eq.s32.totalorder %v486, 1
        %vm489 = vcmp.eq.s32.totalorder %v487, 1
        %v490 = vsel %vm488, %v484, 0.0
        %v491 = vsel %vm489, %v485, 0.0
        %492 = vset.pattern.permute.xlu0 12
        %493 = vperm.xlu0 %492, %v174
        %v494 = vpop.permute.xlu0 %493
        %v496 = vmul.f32 %v490, %v494
        %v497 = vmul.f32 %v491, %v494
        %v498 = vadd.f32 %v477, %v496
        %v499 = vadd.f32 %v478, %v497
        %500 = vrot.lane.b32.xlu0 %v326, 111
        %v501 = vpop.permute.xlu0 %500
        %502 = vrot.lane.b32.xlu0 %v327, 111
        %v503 = vpop.permute.xlu0 %502
        %vm504 = vcmp.lt.s32.totalorder %v329, 111
        %v505 = vsel %vm504, %v501, %v503
        %v506 = vsel %vm504, %v503, %v501
        %vm507 = vmand %vm335, %vm339
        %vm508 = vmand %vm336, %vm340
        %v509 = vsel %vm507, 1, 0
        %v510 = vsel %vm508, 1, 0
        %vm511 = vcmp.eq.s32.totalorder %v509, 1
        %vm512 = vcmp.eq.s32.totalorder %v510, 1
        %v513 = vsel %vm511, %v505, 0.0
        %v514 = vsel %vm512, %v506, 0.0
        %515 = vset.pattern.permute.xlu0 13
        %516 = vperm.xlu0 %515, %v174
        %v517 = vpop.permute.xlu0 %516
        %v519 = vmul.f32 %v513, %v517
        %v520 = vmul.f32 %v514, %v517
        %v521 = vadd.f32 %v498, %v519
        %v522 = vadd.f32 %v499, %v520
        %523 = vset.pattern.permute.xlu0 14
        %524 = vperm.xlu0 %523, %v174
        %v525 = vpop.permute.xlu0 %524
        %v527 = vadd.f32 %v521, %v525
        %v528 = vadd.f32 %v522, %v525
        %v529 = vmax.f32 %v527, 0.0
        %v530 = vmax.f32 %v528, 0.0
        %531 = vst [vmem:[%s172] sm:$0xff] %v529
        %532 = vst [vmem:[%s172 + $0x8] sm:$0xff] %v530
        %s533 = sand.u32 %s75, 1
        %s534 = scalar_lea.sflag [#allocation4], %s533
        %s535 = sand.u32 %s75, 1
        %s536 = smul.addr %s535, 16
        %s537 = scalar_lea.vmem [#allocation7], %s536
        // Predicated region
        $region37: #{tpu_custom_call.1} parent=27 // pred_check
          %p538 = pneg %p85
        $region38: #{tpu_custom_call.1} parent=27 // pred_check_branch
          %540 = sbr.rel (%p538) target = $region40
        $region39: #{tpu_custom_call.1} parent=27 // pred_region
          %s542 = ssub.s32 256, 256
          %543 = vsyncadd %s534, %s542
          %s544 = smul.addr %s20, 2
          %s545 = smul.addr %s544, 128
          %s546 = scalar_lea.hbm %s2, %s545
          %s548 = sshll.u32 %s537, 4
          %s549 = int_to_ptr.vmem [resolvable:$true] %s548
          %551 = dma.vmem_to_hbm [thread:$0]  %s549, 256, %s546, %s534
        $region40: #{tpu_custom_call.1} parent=27 // pred_fallthru
          _
      $region28: #{tpu_custom_call.1} parent=5 // pred_fallthru
        _
      %p552 = scmp.le.s32.totalorder 2, %s15
      // Predicated region
      $region41: #{tpu_custom_call.1} parent=5 // pred_check
        %p553 = pneg %p552
      $region42: #{tpu_custom_call.1} parent=5 // pred_check_branch
        %555 = sbr.rel (%p553) target = $region44
      $region43: #{tpu_custom_call.1} parent=5 // pred_region
        %s556 = ssub.s32 %s15, 2
        // Predicated region
        $region45: #{tpu_custom_call.1} parent=43 // pred_check
          %p557 = pneg %p91
        $region46: #{tpu_custom_call.1} parent=43 // pred_check_branch
          %559 = sbr.rel (%p557) target = $region48
        $region47: #{tpu_custom_call.1} parent=43 // pred_region
          %s560 = sand.u32 %s76, 1
          %s561 = scalar_lea.sflag [#allocation4], %s560
          %s562 = sand.u32 %s76, 1
          %s563 = smul.addr %s562, 16
          %s564 = scalar_lea.vmem [#allocation7], %s563
          %565 = dma.done %s561, 256
        $region48: #{tpu_custom_call.1} parent=43 // pred_fallthru
          _
      $region44: #{tpu_custom_call.1} parent=5 // pred_fallthru
        _
    $region6: #{tpu_custom_call.1} parent=1 // loop_footer
      %s19 = sadd.s32 1, %s15
    $region7: #{tpu_custom_call.1} parent=1 // loop_footer_branch
      %14 = sbr.rel target = $region3
    $region8: #{tpu_custom_call.1} parent=1 // loop_exit
      _
    %566 = vsyncpa [#allocation3], 1
    %s567 = scalar_lea.sflag [#allocation3], 1
    %568 = vsyncpa %s567, 1
    %569 = vsyncpa [#allocation6], 1
    %570 = vsyncpa [#allocation4], 1
    %s571 = scalar_lea.sflag [#allocation4], 1
    %572 = vsyncpa %s571, 1

</llo_original>
